<compile_context>
chip_gen: v5e
topology: v5e:2x2
jax: 0.10.0
libtpu: 0.0.40
codegen_flags: <defaults>
</compile_context>

<pallas_src>
import functools

import jax
import jax.numpy as jnp
from jax import lax
from jax.experimental import pallas as pl
from jax.experimental.pallas import tpu as pltpu

_LANE = 128


def _round_up(v, m):
    return (v + m - 1) // m * m


def _triplet_kernel(x_ref, sq_anch_ref, sq_cand_ref, t_anch_ref, t_cand_ref,
                    v_cand_ref, out_ref, gram_acc, *, margin, tm):
    i = pl.program_id(0)                      # anchor (row) block
    k = pl.program_id(1)                      # feature tile (reduction axis)

    @pl.when(k == 0)
    def _():
        gram_acc[...] = jnp.zeros_like(gram_acc)

    # Full-batch feature tile (candidates); the anchor sub-block is sliced out of the
    # same resident VMEM tile (no second input stream).  gram[c, a] += <x_c, x_a>,
    # MXU operands in gram_dtype (bf16 default), accumulation in f32.
    x_all = x_ref[...]                                        # (n_pad, tk)
    row0 = pl.multiple_of(i * tm, tm)
    x_anch = x_ref[pl.ds(row0, tm), :]                        # (tm, tk)
    gram_acc[...] += lax.dot_general(
        x_all, x_anch,
        dimension_numbers=(((1,), (1,)), ((), ())),           # contract feature axes
        preferred_element_type=jnp.float32)                   # (n_pad, tm)

    @pl.when(k == pl.num_programs(1) - 1)
    def _():
        # dist2[c, a] = ||x_c||^2 + ||x_a||^2 - 2 <x_c, x_a>   (f32, candidates x anchors)
        dist2 = sq_cand_ref[...] + sq_anch_ref[...] - 2.0 * gram_acc[...]

        same = t_cand_ref[...] == t_anch_ref[...]             # (n_pad, tm)
        valid_c = v_cand_ref[...] > 0                         # (n_pad, 1) candidate mask
        pos = jnp.logical_and(same, valid_c)
        neg = jnp.logical_and(jnp.logical_not(same), valid_c)

        big = jnp.float32(1e30)
        # sqrt is monotone -> mine on squared distances; sqrt only the (1, tm) results.
        d2_ap = jnp.max(jnp.where(pos, dist2, -big), axis=0, keepdims=True)
        d2_an = jnp.min(jnp.where(neg, dist2, big), axis=0, keepdims=True)
        dist_ap = jnp.sqrt(jnp.maximum(d2_ap, 1e-12))
        dist_an = jnp.sqrt(jnp.maximum(d2_an, 1e-12))

        # MarginRankingLoss(margin)(dist_an, dist_ap, y=1): per-anchor hinge terms,
        # lane-dense (1, tm) store; padded anchors are discarded by the wrapper.
        hinge = jnp.maximum(dist_ap - dist_an + margin, 0.0)
        out_ref[...] = hinge.reshape(out_ref.shape)


def _choose_tiles(n, d, xbytes):
    n_pad = _round_up(max(n, 1), _LANE)
    # Anchor-block width (MXU result columns / output lanes): largest of 512/256/128
    # that divides n_pad and keeps Gram slab + epilogue temporaries modest.
    tm = _LANE
    for cand in (512, 256):
        if n_pad % cand == 0 and 5 * n_pad * cand * 4 <= 24 * (1 << 20):
            tm = cand
            break
    # Feature tile: as large as a ~16 MiB double-buffered x stream allows
    # (multiple of 128, capped at 2048); a single tile when d fits.
    tk_budget = 16 * (1 << 20)
    tk_cap = (tk_budget // (2 * n_pad * xbytes)) // _LANE * _LANE
    tk_cap = max(_LANE, min(2048, tk_cap))
    d_pad = _round_up(max(d, 1), _LANE)
    if d_pad <= tk_cap:
        tk = d_pad
    else:
        tk = tk_cap
        d_pad = _round_up(d, tk)
    return n_pad, d_pad, tm, tk


def triplet_loss(inputs, targets, margin=0.3, gram_dtype=jnp.bfloat16):
    """Hard-mining triplet loss.

    inputs: (n, d) float features; targets: (n,) integer labels.
    gram_dtype: MXU operand dtype for the Gram matrix (bf16 default = fast path on
    all TPU generations; pass jnp.float32 for reference-exact numerics).
    """
    n, d = inputs.shape
    x32 = inputs.astype(jnp.float32)
    t = targets.astype(jnp.int32)

    xbytes = jnp.dtype(gram_dtype).itemsize
    n_pad, d_pad, tm, tk = _choose_tiles(n, d, xbytes)

    if (n_pad, d_pad) != (n, d):
        x32 = jnp.pad(x32, ((0, n_pad - n), (0, d_pad - d)))

    # Exact f32 squared norms, computed once in the wrapper (padded rows -> 0).
    sq = jnp.sum(x32 * x32, axis=1)
    sq_row = sq.reshape(1, n_pad)                              # anchor layout (lanes)
    sq_col = sq.reshape(n_pad, 1)                              # candidate layout

    t_pad = jnp.pad(t, (0, n_pad - n), constant_values=-1)     # sentinel for pad rows
    t_row = t_pad.reshape(1, n_pad)
    t_col = t_pad.reshape(n_pad, 1)
    v_col = (jnp.arange(n_pad) < n).astype(jnp.int32).reshape(n_pad, 1)

    xs = x32.astype(gram_dtype)                                # streamed Gram operand

    num_blocks = n_pad // tm
    k_tiles = d_pad // tk

    gram_bytes = n_pad * tm * 4
    vmem_limit = int(min(56 * (1 << 20),                       # v7x-safe cap (64 MiB phys)
                         max(32 * (1 << 20),
                             5 * gram_bytes + 2 * n_pad * tk * xbytes + (1 << 21))))

    kernel = functools.partial(_triplet_kernel, margin=float(margin), tm=tm)

    out = pl.pallas_call(
        kernel,
        out_shape=jax.ShapeDtypeStruct((num_blocks, 1, tm), jnp.float32),
        grid=(num_blocks, k_tiles),
        in_specs=[
            pl.BlockSpec((n_pad, tk), lambda i, k: (0, k)),    # x feature tiles (pipelined)
            pl.BlockSpec((1, tm), lambda i, k: (0, i)),        # ||x_a||^2, anchor block
            pl.BlockSpec((n_pad, 1), lambda i, k: (0, 0)),     # ||x_c||^2, all candidates
            pl.BlockSpec((1, tm), lambda i, k: (0, i)),        # labels, anchor block
            pl.BlockSpec((n_pad, 1), lambda i, k: (0, 0)),     # labels, all candidates
            pl.BlockSpec((n_pad, 1), lambda i, k: (0, 0)),     # candidate validity
        ],
        out_specs=pl.BlockSpec((1, 1, tm), lambda i, k: (i, 0, 0)),
        scratch_shapes=[pltpu.VMEM((n_pad, tm), jnp.float32)],  # Gram slab accumulator
        compiler_params=pltpu.CompilerParams(
            dimension_semantics=("parallel", "arbitrary"),
            vmem_limit_bytes=vmem_limit),
    )(xs, sq_row, sq_col, t_row, t_col, v_col)

    # Per-anchor hinge terms, padded anchors dropped; mean over the true batch size.
    return jnp.sum(out.reshape(-1)[:n]) / n


if __name__ == "__main__":
    key = jax.random.PRNGKey(0)
    n, d = 8, 32  # small mini-batch of feature vectors
    inputs = jax.random.normal(key, (n, d), dtype=jnp.float32)
    # 4 identities x 2 samples each: every row has >=1 positive and >=1 negative.
    targets = jnp.array([0, 0, 1, 1, 2, 2, 3, 3], dtype=jnp.int32)

    # Pure-JAX reference of the same math (hard mining + margin ranking loss, mean).
    sq = jnp.sum(inputs * inputs, axis=1, keepdims=True)
    dist = jnp.sqrt(jnp.maximum(sq + sq.T - 2.0 * inputs @ inputs.T, 1e-12))
    mask = targets[:, None] == targets[None, :]
    ap = jnp.max(jnp.where(mask, dist, -jnp.inf), axis=1)
    an = jnp.min(jnp.where(mask, jnp.inf, dist), axis=1)
    ref = jnp.mean(jnp.maximum(ap - an + 0.3, 0.0))

    # Reference-exact f32 Gram path.
    loss_f32 = triplet_loss(inputs, targets, gram_dtype=jnp.float32)
    jax.block_until_ready(loss_f32)
    assert jnp.allclose(loss_f32, ref, rtol=1e-5, atol=1e-5), (loss_f32, ref)

    # Default fast path: bf16 MXU operands, everything else f32 (looser tolerance —
    # hard-mined triplet loss is stable to the ~0.4% bf16 Gram rounding).
    loss_bf16 = triplet_loss(inputs, targets)
    jax.block_until_ready(loss_bf16)
    assert jnp.allclose(loss_bf16, ref, rtol=5e-2, atol=5e-2), (loss_bf16, ref)

    print("KERNEL_OK")
</pallas_src>

<mosaic_0001>
module attributes {stable_mosaic.version = 11 : i64} {
  func.func @_triplet_kernel(%arg0: i32, %arg1: i32, %arg2: memref<128x128xf32, #tpu.memory_space<vmem>>, %arg3: memref<1x128xf32, #tpu.memory_space<vmem>>, %arg4: memref<128x1xf32, #tpu.memory_space<vmem>>, %arg5: memref<1x128xi32, #tpu.memory_space<vmem>>, %arg6: memref<128x1xi32, #tpu.memory_space<vmem>>, %arg7: memref<128x1xi32, #tpu.memory_space<vmem>>, %arg8: memref<1x1x128xf32, #tpu.memory_space<vmem>>, %arg9: memref<128x128xf32, #tpu.memory_space<vmem>>) attributes {dimension_semantics = [#tpu.dimension_semantics<parallel>, #tpu.dimension_semantics<arbitrary>], iteration_bounds = array<i64: 1, 1>, scalar_prefetch = 0 : i64, scratch_operands = 1 : i64, tpu.core_type = #tpu.core_type<tc>, window_params = [{transform_indices = @transform_0, window_bounds = array<i64: 128, 128>}, {transform_indices = @transform_1, window_bounds = array<i64: 1, 128>}, {pipeline_mode = #tpu.pipeline_mode<synchronous>, transform_indices = @transform_2, window_bounds = array<i64: 128, 1>}, {transform_indices = @transform_3, window_bounds = array<i64: 1, 128>}, {pipeline_mode = #tpu.pipeline_mode<synchronous>, transform_indices = @transform_4, window_bounds = array<i64: 128, 1>}, {pipeline_mode = #tpu.pipeline_mode<synchronous>, transform_indices = @transform_5, window_bounds = array<i64: 128, 1>}, {transform_indices = @transform_6, window_bounds = array<i64: 1, 1, 128>}]} {
    %c0_i32 = arith.constant 0 : i32
    %0 = arith.cmpi eq, %arg1, %c0_i32 : i32
    %1 = arith.extui %0 : i1 to i32
    %c0_i32_0 = arith.constant 0 : i32
    %2 = arith.cmpi ne, %1, %c0_i32_0 : i32
    scf.if %2 {
      %cst_9 = arith.constant 0.000000e+00 : f32
      %15 = vector.broadcast %cst_9 : f32 to vector<128x128xf32>
      %c0_10 = arith.constant 0 : index
      %c0_11 = arith.constant 0 : index
      %16 = vector.load %arg9[%c0_10, %c0_11] : memref<128x128xf32, #tpu.memory_space<vmem>>, vector<128x128xf32>
      tpu.vector_store %arg9[%c0_10, %c0_11], %15 {strides = array<i32>} : memref<128x128xf32, #tpu.memory_space<vmem>>, vector<128x128xf32>,
    } else {
    }
    %c0 = arith.constant 0 : index
    %c0_1 = arith.constant 0 : index
    %3 = vector.load %arg2[%c0, %c0_1] : memref<128x128xf32, #tpu.memory_space<vmem>>, vector<128x128xf32>
    %c128_i32 = arith.constant 128 : i32
    %4 = arith.muli %arg0, %c128_i32 : i32
    %5 = tpu.assume_multiple %4, 128 : i32
    %6 = arith.index_cast %5 : i32 to index
    %c0_2 = arith.constant 0 : index
    %7 = vector.load %arg2[%6, %c0_2] : memref<128x128xf32, #tpu.memory_space<vmem>>, vector<128x128xf32>
    %c0_3 = arith.constant 0 : index
    %c0_4 = arith.constant 0 : index
    %8 = vector.load %arg9[%c0_3, %c0_4] : memref<128x128xf32, #tpu.memory_space<vmem>>, vector<128x128xf32>
    %cst = arith.constant dense<0.000000e+00> : vector<128x128xf32>
    %9 = tpu.matmul %3, %7, %cst {dimension_numbers = #tpu.dot_dimension_numbers<[1], [1], [0], [0], [0, 0, 1, 0], [], []>} : vector<128x128xf32>, vector<128x128xf32>, vector<128x128xf32> -> vector<128x128xf32>
    %10 = arith.addf %8, %9 : vector<128x128xf32>
    %c0_5 = arith.constant 0 : index
    %c0_6 = arith.constant 0 : index
    %11 = vector.load %arg9[%c0_5, %c0_6] : memref<128x128xf32, #tpu.memory_space<vmem>>, vector<128x128xf32>
    tpu.vector_store %arg9[%c0_5, %c0_6], %10 {strides = array<i32>} : memref<128x128xf32, #tpu.memory_space<vmem>>, vector<128x128xf32>,
    %c0_i32_7 = arith.constant 0 : i32
    %12 = arith.cmpi eq, %arg1, %c0_i32_7 : i32
    %13 = arith.extui %12 : i1 to i32
    %c0_i32_8 = arith.constant 0 : i32
    %14 = arith.cmpi ne, %13, %c0_i32_8 : i32
    scf.if %14 {
      %c0_9 = arith.constant 0 : index
      %c0_10 = arith.constant 0 : index
      %15 = vector.load %arg4[%c0_9, %c0_10] : memref<128x1xf32, #tpu.memory_space<vmem>>, vector<128x1xf32>
      %c0_11 = arith.constant 0 : index
      %c0_12 = arith.constant 0 : index
      %16 = vector.load %arg3[%c0_11, %c0_12] : memref<1x128xf32, #tpu.memory_space<vmem>>, vector<1x128xf32>
      %17 = vector.broadcast %15 : vector<128x1xf32> to vector<128x128xf32>
      %18 = vector.broadcast %16 : vector<1x128xf32> to vector<128x128xf32>
      %19 = arith.addf %17, %18 : vector<128x128xf32>
      %c0_13 = arith.constant 0 : index
      %c0_14 = arith.constant 0 : index
      %20 = vector.load %arg9[%c0_13, %c0_14] : memref<128x128xf32, #tpu.memory_space<vmem>>, vector<128x128xf32>
      %cst_15 = arith.constant 2.000000e+00 : f32
      %21 = vector.broadcast %cst_15 : f32 to vector<128x128xf32>
      %22 = arith.mulf %21, %20 : vector<128x128xf32>
      %23 = arith.subf %19, %22 : vector<128x128xf32>
      %c0_16 = arith.constant 0 : index
      %c0_17 = arith.constant 0 : index
      %24 = vector.load %arg6[%c0_16, %c0_17] : memref<128x1xi32, #tpu.memory_space<vmem>>, vector<128x1xi32>
      %c0_18 = arith.constant 0 : index
      %c0_19 = arith.constant 0 : index
      %25 = vector.load %arg5[%c0_18, %c0_19] : memref<1x128xi32, #tpu.memory_space<vmem>>, vector<1x128xi32>
      %26 = vector.broadcast %24 : vector<128x1xi32> to vector<128x128xi32>
      %27 = vector.broadcast %25 : vector<1x128xi32> to vector<128x128xi32>
      %28 = arith.cmpi eq, %26, %27 : vector<128x128xi32>
      %c0_20 = arith.constant 0 : index
      %c0_21 = arith.constant 0 : index
      %29 = vector.load %arg7[%c0_20, %c0_21] : memref<128x1xi32, #tpu.memory_space<vmem>>, vector<128x1xi32>
      %c0_i32_22 = arith.constant 0 : i32
      %30 = vector.broadcast %c0_i32_22 : i32 to vector<128x1xi32>
      %31 = arith.cmpi sgt, %29, %30 : vector<128x1xi32>
      %32 = vector.broadcast %31 : vector<128x1xi1> to vector<128x128xi1>
      %33 = arith.andi %28, %32 : vector<128x128xi1>
      %cst_23 = arith.constant dense<true> : vector<128x128xi1>
      %34 = arith.xori %28, %cst_23 : vector<128x128xi1>
      %35 = vector.broadcast %31 : vector<128x1xi1> to vector<128x128xi1>
      %36 = arith.andi %34, %35 : vector<128x128xi1>
      %cst_24 = arith.constant 0.000000e+00 : f32
      %cst_25 = arith.constant 1.000000e+30 : f32
      %37 = arith.subf %cst_24, %cst_25 : f32
      %38 = vector.broadcast %37 : f32 to vector<128x128xf32>
      %39 = arith.select %33, %23, %38 : vector<128x128xi1>, vector<128x128xf32>
      %cst_26 = arith.constant dense<0xFF800000> : vector<128xf32>
      %40 = vector.multi_reduction <maximumf>, %39, %cst_26 [0] : vector<128x128xf32> to vector<128xf32>
      %41 = vector.shape_cast %40 : vector<128xf32> to vector<1x128xf32>
      %cst_27 = arith.constant 1.000000e+30 : f32
      %42 = vector.broadcast %cst_27 : f32 to vector<128x128xf32>
      %43 = arith.select %36, %23, %42 : vector<128x128xi1>, vector<128x128xf32>
      %cst_28 = arith.constant dense<0x7F800000> : vector<128xf32>
      %44 = vector.multi_reduction <minimumf>, %43, %cst_28 [0] : vector<128x128xf32> to vector<128xf32>
      %45 = vector.shape_cast %44 : vector<128xf32> to vector<1x128xf32>
      %cst_29 = arith.constant 9.99999996E-13 : f32
      %46 = vector.broadcast %cst_29 : f32 to vector<1x128xf32>
      %47 = arith.maximumf %41, %46 : vector<1x128xf32>
      %48 = math.sqrt %47 : vector<1x128xf32>
      %cst_30 = arith.constant 9.99999996E-13 : f32
      %49 = vector.broadcast %cst_30 : f32 to vector<1x128xf32>
      %50 = arith.maximumf %45, %49 : vector<1x128xf32>
      %51 = math.sqrt %50 : vector<1x128xf32>
      %52 = arith.subf %48, %51 : vector<1x128xf32>
      %cst_31 = arith.constant 3.000000e-01 : f32
      %53 = vector.broadcast %cst_31 : f32 to vector<1x128xf32>
      %54 = arith.addf %52, %53 : vector<1x128xf32>
      %cst_32 = arith.constant 0.000000e+00 : f32
      %55 = vector.broadcast %cst_32 : f32 to vector<1x128xf32>
      %56 = arith.maximumf %54, %55 : vector<1x128xf32>
      %57 = vector.shape_cast %56 : vector<1x128xf32> to vector<1x1x128xf32>
      %c0_33 = arith.constant 0 : index
      %c0_34 = arith.constant 0 : index
      %c0_35 = arith.constant 0 : index
      %58 = vector.load %arg8[%c0_33, %c0_34, %c0_35] : memref<1x1x128xf32, #tpu.memory_space<vmem>>, vector<1x1x128xf32>
      tpu.vector_store %arg8[%c0_33, %c0_34, %c0_35], %57 {strides = array<i32>} : memref<1x1x128xf32, #tpu.memory_space<vmem>>, vector<1x1x128xf32>,
    } else {
    }
    return
  }
  func.func @transform_0(%arg0: i32, %arg1: i32) -> (i32, i32) {
    %c0_i32 = arith.constant 0 : i32
    %c0_i32_0 = arith.constant 0 : i32
    return %c0_i32, %arg1 : i32, i32
  }
  func.func @transform_1(%arg0: i32, %arg1: i32) -> (i32, i32) {
    %c0_i32 = arith.constant 0 : i32
    %c0_i32_0 = arith.constant 0 : i32
    return %c0_i32, %arg0 : i32, i32
  }
  func.func @transform_2(%arg0: i32, %arg1: i32) -> (i32, i32) {
    %c0_i32 = arith.constant 0 : i32
    %c0_i32_0 = arith.constant 0 : i32
    %c0_i32_1 = arith.constant 0 : i32
    return %c0_i32, %c0_i32_0 : i32, i32
  }
  func.func @transform_3(%arg0: i32, %arg1: i32) -> (i32, i32) {
    %c0_i32 = arith.constant 0 : i32
    %c0_i32_0 = arith.constant 0 : i32
    return %c0_i32, %arg0 : i32, i32
  }
  func.func @transform_4(%arg0: i32, %arg1: i32) -> (i32, i32) {
    %c0_i32 = arith.constant 0 : i32
    %c0_i32_0 = arith.constant 0 : i32
    %c0_i32_1 = arith.constant 0 : i32
    return %c0_i32, %c0_i32_0 : i32, i32
  }
  func.func @transform_5(%arg0: i32, %arg1: i32) -> (i32, i32) {
    %c0_i32 = arith.constant 0 : i32
    %c0_i32_0 = arith.constant 0 : i32
    %c0_i32_1 = arith.constant 0 : i32
    return %c0_i32, %c0_i32_0 : i32, i32
  }
  func.func @transform_6(%arg0: i32, %arg1: i32) -> (i32, i32, i32) {
    %c0_i32 = arith.constant 0 : i32
    %c0_i32_0 = arith.constant 0 : i32
    %c0_i32_1 = arith.constant 0 : i32
    return %arg0, %c0_i32, %c0_i32_0 : i32, i32, i32
  }
}

</mosaic_0001>

<llo_original>
// kernel: tpu_custom_call.1
$region0: #{tpu_custom_call.1}
  #allocation0 [shape = 'u32[]', space=smem, size = 0x4, offset = 0x4, fixed_abs, tag = 'smem constant byte address 0x4 - core index']
  #allocation1 [shape = 'u32[72,128]{1,0:T(1,128)}', space=vmem, size = 0x9000, scoped, tag = 'internal scratch']
  #allocation2 [shape = 'f32[128,128]{1,0:T(8,128)}', space=vmem, size = 0x10000, scoped, tag = 'scratch operand']
  %s0 = inlined_call_operand.vmem [shape: f32[128,128], index: 0, kind: input, shape index: {}]
  %s1 = inlined_call_operand.vmem [shape: f32[1,128], index: 1, kind: input, shape index: {}]
  %s2 = inlined_call_operand.vmem [shape: f32[128,1], index: 2, kind: input, shape index: {}]
  %s3 = inlined_call_operand.vmem [shape: s32[1,128], index: 3, kind: input, shape index: {}]
  %s4 = inlined_call_operand.vmem [shape: s32[128,1], index: 4, kind: input, shape index: {}]
  %s5 = inlined_call_operand.vmem [shape: s32[128,1], index: 5, kind: input, shape index: {}]
  %s6 = inlined_call_operand.hbm [shape: f32[1,1,128], index: 6, kind: output, shape index: {}]
  %s7 = sld [smem:[#allocation0]]
  $region42: #{tpu_custom_call.1} parent=0
    _
  %s9 = ssub.s32 1, %s7
  %s10 = scalar_select 0, %s9, %s7
  $region1: #{tpu_custom_call.1} parent=0
    #allocation3 [shape = 'u8[512]{0}', space=vmem, size = 0x400, scoped, tag = 'output window, operand 0, single buffered']
    #allocation4 [shape = 's32[1]{0}', space=sflag, size = 0x4, scoped, tag = 'scoped memory for tpu_custom_call.1']
    %11 = vsyncpa [#allocation4], 0
    // Predicated region
    $region2: #{tpu_custom_call.1} parent=1 // pred_check
      _
    $region3: #{tpu_custom_call.1} parent=1 // pred_check_branch
      %13 = sbr.rel (0) target = $region5
    $region4: #{tpu_custom_call.1} parent=1 // pred_region
      _
    $region5: #{tpu_custom_call.1} parent=1 // pred_fallthru
      _
    // Predicated region
    $region6: #{tpu_custom_call.1} parent=1 // pred_check
      _
    $region7: #{tpu_custom_call.1} parent=1 // pred_check_branch
      %15 = sbr.rel (0) target = $region9
    $region8: #{tpu_custom_call.1} parent=1 // pred_region
      _
    $region9: #{tpu_custom_call.1} parent=1 // pred_fallthru
      _
    // Predicated region
    $region10: #{tpu_custom_call.1} parent=1 // pred_check
      _
    $region11: #{tpu_custom_call.1} parent=1 // pred_check_branch
      %17 = sbr.rel (0) target = $region13
    $region12: #{tpu_custom_call.1} parent=1 // pred_region
      _
    $region13: #{tpu_custom_call.1} parent=1 // pred_fallthru
      _
    // Predicated region
    $region14: #{tpu_custom_call.1} parent=1 // pred_check
      _
    $region15: #{tpu_custom_call.1} parent=1 // pred_check_branch
      %19 = sbr.rel (0) target = $region17
    $region16: #{tpu_custom_call.1} parent=1 // pred_region
      _
    $region17: #{tpu_custom_call.1} parent=1 // pred_fallthru
      _
    // Predicated region
    $region18: #{tpu_custom_call.1} parent=1 // pred_check
      _
    $region19: #{tpu_custom_call.1} parent=1 // pred_check_branch
      %21 = sbr.rel (0) target = $region21
    $region20: #{tpu_custom_call.1} parent=1 // pred_region
      _
    $region21: #{tpu_custom_call.1} parent=1 // pred_fallthru
      _
    // Predicated region
    $region22: #{tpu_custom_call.1} parent=1 // pred_check
      _
    $region23: #{tpu_custom_call.1} parent=1 // pred_check_branch
      %23 = sbr.rel (0) target = $region25
    $region24: #{tpu_custom_call.1} parent=1 // pred_region
      _
    $region25: #{tpu_custom_call.1} parent=1 // pred_fallthru
      _
    %p24 = scmp.eq.s32.totalorder 0, 0
    // Predicated region
    $region26: #{tpu_custom_call.1} parent=1 // pred_check
      %p25 = pneg %p24
    $region27: #{tpu_custom_call.1} parent=1 // pred_check_branch
      %27 = sbr.rel (%p25) target = $region29
    $region28: #{tpu_custom_call.1} parent=1 // pred_region
      %28 = vst [vmem:[#allocation2] sm:$0xff] 0.0
      %29 = vst [vmem:[#allocation2 + $0x8] sm:$0xff] 0.0
      %30 = vst [vmem:[#allocation2 + $0x10] sm:$0xff] 0.0
      %31 = vst [vmem:[#allocation2 + $0x18] sm:$0xff] 0.0
      %32 = vst [vmem:[#allocation2 + $0x20] sm:$0xff] 0.0
      %33 = vst [vmem:[#allocation2 + $0x28] sm:$0xff] 0.0
      %34 = vst [vmem:[#allocation2 + $0x30] sm:$0xff] 0.0
      %35 = vst [vmem:[#allocation2 + $0x38] sm:$0xff] 0.0
      %36 = vst [vmem:[#allocation2 + $0x40] sm:$0xff] 0.0
      %37 = vst [vmem:[#allocation2 + $0x48] sm:$0xff] 0.0
      %38 = vst [vmem:[#allocation2 + $0x50] sm:$0xff] 0.0
      %39 = vst [vmem:[#allocation2 + $0x58] sm:$0xff] 0.0
      %40 = vst [vmem:[#allocation2 + $0x60] sm:$0xff] 0.0
      %41 = vst [vmem:[#allocation2 + $0x68] sm:$0xff] 0.0
      %42 = vst [vmem:[#allocation2 + $0x70] sm:$0xff] 0.0
      %43 = vst [vmem:[#allocation2 + $0x78] sm:$0xff] 0.0
    $region29: #{tpu_custom_call.1} parent=1 // pred_fallthru
      _
    %v44 = vld [vmem:[%s0] sm:$0xff]
    %v45 = vld [vmem:[%s0 + $0x8] sm:$0xff]
    %v46 = vld [vmem:[%s0 + $0x10] sm:$0xff]
    %v47 = vld [vmem:[%s0 + $0x18] sm:$0xff]
    %v48 = vld [vmem:[%s0 + $0x20] sm:$0xff]
    %v49 = vld [vmem:[%s0 + $0x28] sm:$0xff]
    %v50 = vld [vmem:[%s0 + $0x30] sm:$0xff]
    %v51 = vld [vmem:[%s0 + $0x38] sm:$0xff]
    %v52 = vld [vmem:[%s0 + $0x40] sm:$0xff]
    %v53 = vld [vmem:[%s0 + $0x48] sm:$0xff]
    %v54 = vld [vmem:[%s0 + $0x50] sm:$0xff]
    %v55 = vld [vmem:[%s0 + $0x58] sm:$0xff]
    %v56 = vld [vmem:[%s0 + $0x60] sm:$0xff]
    %v57 = vld [vmem:[%s0 + $0x68] sm:$0xff]
    %v58 = vld [vmem:[%s0 + $0x70] sm:$0xff]
    %v59 = vld [vmem:[%s0 + $0x78] sm:$0xff]
    %s60 = smul.u32 0, 128
    %s61 = scalar_lea.vmem %s0, %s60
    %v62 = vld [vmem:[%s61] sm:$0xff]
    %v63 = vld [vmem:[%s61 + $0x8] sm:$0xff]
    %v64 = vld [vmem:[%s61 + $0x10] sm:$0xff]
    %v65 = vld [vmem:[%s61 + $0x18] sm:$0xff]
    %v66 = vld [vmem:[%s61 + $0x20] sm:$0xff]
    %v67 = vld [vmem:[%s61 + $0x28] sm:$0xff]
    %v68 = vld [vmem:[%s61 + $0x30] sm:$0xff]
    %v69 = vld [vmem:[%s61 + $0x38] sm:$0xff]
    %v70 = vld [vmem:[%s61 + $0x40] sm:$0xff]
    %v71 = vld [vmem:[%s61 + $0x48] sm:$0xff]
    %v72 = vld [vmem:[%s61 + $0x50] sm:$0xff]
    %v73 = vld [vmem:[%s61 + $0x58] sm:$0xff]
    %v74 = vld [vmem:[%s61 + $0x60] sm:$0xff]
    %v75 = vld [vmem:[%s61 + $0x68] sm:$0xff]
    %v76 = vld [vmem:[%s61 + $0x70] sm:$0xff]
    %v77 = vld [vmem:[%s61 + $0x78] sm:$0xff]
    %v78 = vld [vmem:[#allocation2] sm:$0xff]
    %v79 = vld [vmem:[#allocation2 + $0x8] sm:$0xff]
    %v80 = vld [vmem:[#allocation2 + $0x10] sm:$0xff]
    %v81 = vld [vmem:[#allocation2 + $0x18] sm:$0xff]
    %v82 = vld [vmem:[#allocation2 + $0x20] sm:$0xff]
    %v83 = vld [vmem:[#allocation2 + $0x28] sm:$0xff]
    %v84 = vld [vmem:[#allocation2 + $0x30] sm:$0xff]
    %v85 = vld [vmem:[#allocation2 + $0x38] sm:$0xff]
    %v86 = vld [vmem:[#allocation2 + $0x40] sm:$0xff]
    %v87 = vld [vmem:[#allocation2 + $0x48] sm:$0xff]
    %v88 = vld [vmem:[#allocation2 + $0x50] sm:$0xff]
    %v89 = vld [vmem:[#allocation2 + $0x58] sm:$0xff]
    %v90 = vld [vmem:[#allocation2 + $0x60] sm:$0xff]
    %v91 = vld [vmem:[#allocation2 + $0x68] sm:$0xff]
    %v92 = vld [vmem:[#allocation2 + $0x70] sm:$0xff]
    %v93 = vld [vmem:[#allocation2 + $0x78] sm:$0xff]
    %94 = vmatpush.xpose.msra.mxu0 %v77
    %95 = vmatpush.xpose.msra.mxu0 %v76
    %96 = vmatpush.xpose.msra.mxu0 %v75
    %97 = vmatpush.xpose.msra.mxu0 %v74
    %98 = vmatpush.xpose.msra.mxu0 %v73
    %99 = vmatpush.xpose.msra.mxu0 %v72
    %100 = vmatpush.xpose.msra.mxu0 %v71
    %101 = vmatpush.xpose.msra.mxu0 %v70
    %102 = vmatpush.xpose.msra.mxu0 %v69
    %103 = vmatpush.xpose.msra.mxu0 %v68
    %104 = vmatpush.xpose.msra.mxu0 %v67
    %105 = vmatpush.xpose.msra.mxu0 %v66
    %106 = vmatpush.xpose.msra.mxu0 %v65
    %107 = vmatpush.xpose.msra.mxu0 %v64
    %108 = vmatpush.xpose.msra.mxu0 %v63
    %109 = vmatpush.xpose.msra.mxu0 %v62
    %110 = vmatmul.f32.gmra.mxu0 %v44
    %v111 = vpop.f32.mrf.mxu0
    %v112 = vadd.f32 0.0, %v111
    %113 = vmatmul.f32.gmra.mxu0 %v45
    %v114 = vpop.f32.mrf.mxu0
    %v115 = vadd.f32 0.0, %v114
    %116 = vmatmul.f32.gmra.mxu0 %v46
    %v117 = vpop.f32.mrf.mxu0
    %v118 = vadd.f32 0.0, %v117
    %119 = vmatmul.f32.gmra.mxu0 %v47
    %v120 = vpop.f32.mrf.mxu0
    %v121 = vadd.f32 0.0, %v120
    %122 = vmatmul.f32.gmra.mxu0 %v48
    %v123 = vpop.f32.mrf.mxu0
    %v124 = vadd.f32 0.0, %v123
    %125 = vmatmul.f32.gmra.mxu0 %v49
    %v126 = vpop.f32.mrf.mxu0
    %v127 = vadd.f32 0.0, %v126
    %128 = vmatmul.f32.gmra.mxu0 %v50
    %v129 = vpop.f32.mrf.mxu0
    %v130 = vadd.f32 0.0, %v129
    %131 = vmatmul.f32.gmra.mxu0 %v51
    %v132 = vpop.f32.mrf.mxu0
    %v133 = vadd.f32 0.0, %v132
    %134 = vmatmul.f32.gmra.mxu0 %v52
    %v135 = vpop.f32.mrf.mxu0
    %v136 = vadd.f32 0.0, %v135
    %137 = vmatmul.f32.gmra.mxu0 %v53
    %v138 = vpop.f32.mrf.mxu0
    %v139 = vadd.f32 0.0, %v138
    %140 = vmatmul.f32.gmra.mxu0 %v54
    %v141 = vpop.f32.mrf.mxu0
    %v142 = vadd.f32 0.0, %v141
    %143 = vmatmul.f32.gmra.mxu0 %v55
    %v144 = vpop.f32.mrf.mxu0
    %v145 = vadd.f32 0.0, %v144
    %146 = vmatmul.f32.gmra.mxu0 %v56
    %v147 = vpop.f32.mrf.mxu0
    %v148 = vadd.f32 0.0, %v147
    %149 = vmatmul.f32.gmra.mxu0 %v57
    %v150 = vpop.f32.mrf.mxu0
    %v151 = vadd.f32 0.0, %v150
    %152 = vmatmul.f32.gmra.mxu0 %v58
    %v153 = vpop.f32.mrf.mxu0
    %v154 = vadd.f32 0.0, %v153
    %155 = vmatmul.f32.gmra.mxu0 %v59
    %v156 = vpop.f32.mrf.mxu0
    %v157 = vadd.f32 0.0, %v156
    %158 = vdwg.mxu0
    %v159 = vadd.f32 %v78, %v112
    %v160 = vadd.f32 %v79, %v115
    %v161 = vadd.f32 %v80, %v118
    %v162 = vadd.f32 %v81, %v121
    %v163 = vadd.f32 %v82, %v124
    %v164 = vadd.f32 %v83, %v127
    %v165 = vadd.f32 %v84, %v130
    %v166 = vadd.f32 %v85, %v133
    %v167 = vadd.f32 %v86, %v136
    %v168 = vadd.f32 %v87, %v139
    %v169 = vadd.f32 %v88, %v142
    %v170 = vadd.f32 %v89, %v145
    %v171 = vadd.f32 %v90, %v148
    %v172 = vadd.f32 %v91, %v151
    %v173 = vadd.f32 %v92, %v154
    %v174 = vadd.f32 %v93, %v157
    %175 = vst [vmem:[#allocation2] sm:$0xff] %v159
    %176 = vst [vmem:[#allocation2 + $0x8] sm:$0xff] %v160
    %177 = vst [vmem:[#allocation2 + $0x10] sm:$0xff] %v161
    %178 = vst [vmem:[#allocation2 + $0x18] sm:$0xff] %v162
    %179 = vst [vmem:[#allocation2 + $0x20] sm:$0xff] %v163
    %180 = vst [vmem:[#allocation2 + $0x28] sm:$0xff] %v164
    %181 = vst [vmem:[#allocation2 + $0x30] sm:$0xff] %v165
    %182 = vst [vmem:[#allocation2 + $0x38] sm:$0xff] %v166
    %183 = vst [vmem:[#allocation2 + $0x40] sm:$0xff] %v167
    %184 = vst [vmem:[#allocation2 + $0x48] sm:$0xff] %v168
    %185 = vst [vmem:[#allocation2 + $0x50] sm:$0xff] %v169
    %186 = vst [vmem:[#allocation2 + $0x58] sm:$0xff] %v170
    %187 = vst [vmem:[#allocation2 + $0x60] sm:$0xff] %v171
    %188 = vst [vmem:[#allocation2 + $0x68] sm:$0xff] %v172
    %189 = vst [vmem:[#allocation2 + $0x70] sm:$0xff] %v173
    %190 = vst [vmem:[#allocation2 + $0x78] sm:$0xff] %v174
    // Predicated region
    $region30: #{tpu_custom_call.1} parent=1 // pred_check
      %p191 = pneg %p24
    $region31: #{tpu_custom_call.1} parent=1 // pred_check_branch
      %193 = sbr.rel (%p191) target = $region33
    $region32: #{tpu_custom_call.1} parent=1 // pred_region
      %v194 = vld [vmem:[%s2] sm:$0xff]
      %v195 = vld [vmem:[%s2 + $0x8] sm:$0xff]
      %v196 = vld [vmem:[%s2 + $0x10] sm:$0xff]
      %v197 = vld [vmem:[%s2 + $0x18] sm:$0xff]
      %v198 = vld [vmem:[%s2 + $0x20] sm:$0xff]
      %v199 = vld [vmem:[%s2 + $0x28] sm:$0xff]
      %v200 = vld [vmem:[%s2 + $0x30] sm:$0xff]
      %v201 = vld [vmem:[%s2 + $0x38] sm:$0xff]
      %v202 = vld [vmem:[%s2 + $0x40] sm:$0xff]
      %v203 = vld [vmem:[%s2 + $0x48] sm:$0xff]
      %v204 = vld [vmem:[%s2 + $0x50] sm:$0xff]
      %v205 = vld [vmem:[%s2 + $0x58] sm:$0xff]
      %v206 = vld [vmem:[%s2 + $0x60] sm:$0xff]
      %v207 = vld [vmem:[%s2 + $0x68] sm:$0xff]
      %v208 = vld [vmem:[%s2 + $0x70] sm:$0xff]
      %v209 = vld [vmem:[%s2 + $0x78] sm:$0xff]
      %v210 = vld [vmem:[%s1] sm:$0x1]
      %212 = vset.pattern.permute.xlu0 0
      %213 = vperm.xlu0 %212, %v194
      %v214 = vpop.permute.xlu0 %213
      %217 = vset.pattern.permute.xlu0 0
      %218 = vperm.xlu0 %217, %v195
      %v219 = vpop.permute.xlu0 %218
      %222 = vset.pattern.permute.xlu0 0
      %223 = vperm.xlu0 %222, %v196
      %v224 = vpop.permute.xlu0 %223
      %227 = vset.pattern.permute.xlu0 0
      %228 = vperm.xlu0 %227, %v197
      %v229 = vpop.permute.xlu0 %228
      %232 = vset.pattern.permute.xlu0 0
      %233 = vperm.xlu0 %232, %v198
      %v234 = vpop.permute.xlu0 %233
      %237 = vset.pattern.permute.xlu0 0
      %238 = vperm.xlu0 %237, %v199
      %v239 = vpop.permute.xlu0 %238
      %242 = vset.pattern.permute.xlu0 0
      %243 = vperm.xlu0 %242, %v200
      %v244 = vpop.permute.xlu0 %243
      %247 = vset.pattern.permute.xlu0 0
      %248 = vperm.xlu0 %247, %v201
      %v249 = vpop.permute.xlu0 %248
      %252 = vset.pattern.permute.xlu0 0
      %253 = vperm.xlu0 %252, %v202
      %v254 = vpop.permute.xlu0 %253
      %257 = vset.pattern.permute.xlu0 0
      %258 = vperm.xlu0 %257, %v203
      %v259 = vpop.permute.xlu0 %258
      %262 = vset.pattern.permute.xlu0 0
      %263 = vperm.xlu0 %262, %v204
      %v264 = vpop.permute.xlu0 %263
      %267 = vset.pattern.permute.xlu0 0
      %268 = vperm.xlu0 %267, %v205
      %v269 = vpop.permute.xlu0 %268
      %272 = vset.pattern.permute.xlu0 0
      %273 = vperm.xlu0 %272, %v206
      %v274 = vpop.permute.xlu0 %273
      %277 = vset.pattern.permute.xlu0 0
      %278 = vperm.xlu0 %277, %v207
      %v279 = vpop.permute.xlu0 %278
      %282 = vset.pattern.permute.xlu0 0
      %283 = vperm.xlu0 %282, %v208
      %v284 = vpop.permute.xlu0 %283
      %287 = vset.pattern.permute.xlu0 0
      %288 = vperm.xlu0 %287, %v209
      %v289 = vpop.permute.xlu0 %288
      %v292 = vperm.slane %v210, 0
      %v294 = vadd.f32 %v214, %v292
      %v295 = vadd.f32 %v219, %v292
      %v296 = vadd.f32 %v224, %v292
      %v297 = vadd.f32 %v229, %v292
      %v298 = vadd.f32 %v234, %v292
      %v299 = vadd.f32 %v239, %v292
      %v300 = vadd.f32 %v244, %v292
      %v301 = vadd.f32 %v249, %v292
      %v302 = vadd.f32 %v254, %v292
      %v303 = vadd.f32 %v259, %v292
      %v304 = vadd.f32 %v264, %v292
      %v305 = vadd.f32 %v269, %v292
      %v306 = vadd.f32 %v274, %v292
      %v307 = vadd.f32 %v279, %v292
      %v308 = vadd.f32 %v284, %v292
      %v309 = vadd.f32 %v289, %v292
      %v310 = vld [vmem:[#allocation2] sm:$0xff]
      %v311 = vld [vmem:[#allocation2 + $0x8] sm:$0xff]
      %v312 = vld [vmem:[#allocation2 + $0x10] sm:$0xff]
      %v313 = vld [vmem:[#allocation2 + $0x18] sm:$0xff]
      %v314 = vld [vmem:[#allocation2 + $0x20] sm:$0xff]
      %v315 = vld [vmem:[#allocation2 + $0x28] sm:$0xff]
      %v316 = vld [vmem:[#allocation2 + $0x30] sm:$0xff]
      %v317 = vld [vmem:[#allocation2 + $0x38] sm:$0xff]
      %v318 = vld [vmem:[#allocation2 + $0x40] sm:$0xff]
      %v319 = vld [vmem:[#allocation2 + $0x48] sm:$0xff]
      %v320 = vld [vmem:[#allocation2 + $0x50] sm:$0xff]
      %v321 = vld [vmem:[#allocation2 + $0x58] sm:$0xff]
      %v322 = vld [vmem:[#allocation2 + $0x60] sm:$0xff]
      %v323 = vld [vmem:[#allocation2 + $0x68] sm:$0xff]
      %v324 = vld [vmem:[#allocation2 + $0x70] sm:$0xff]
      %v325 = vld [vmem:[#allocation2 + $0x78] sm:$0xff]
      %v326 = vmul.f32 %v310, 2.0
      %v327 = vmul.f32 %v311, 2.0
      %v328 = vmul.f32 %v312, 2.0
      %v329 = vmul.f32 %v313, 2.0
      %v330 = vmul.f32 %v314, 2.0
      %v331 = vmul.f32 %v315, 2.0
      %v332 = vmul.f32 %v316, 2.0
      %v333 = vmul.f32 %v317, 2.0
      %v334 = vmul.f32 %v318, 2.0
      %v335 = vmul.f32 %v319, 2.0
      %v336 = vmul.f32 %v320, 2.0
      %v337 = vmul.f32 %v321, 2.0
      %v338 = vmul.f32 %v322, 2.0
      %v339 = vmul.f32 %v323, 2.0
      %v340 = vmul.f32 %v324, 2.0
      %v341 = vmul.f32 %v325, 2.0
      %v342 = vsub.f32 %v294, %v326
      %v343 = vsub.f32 %v295, %v327
      %v344 = vsub.f32 %v296, %v328
      %v345 = vsub.f32 %v297, %v329
      %v346 = vsub.f32 %v298, %v330
      %v347 = vsub.f32 %v299, %v331
      %v348 = vsub.f32 %v300, %v332
      %v349 = vsub.f32 %v301, %v333
      %v350 = vsub.f32 %v302, %v334
      %v351 = vsub.f32 %v303, %v335
      %v352 = vsub.f32 %v304, %v336
      %v353 = vsub.f32 %v305, %v337
      %v354 = vsub.f32 %v306, %v338
      %v355 = vsub.f32 %v307, %v339
      %v356 = vsub.f32 %v308, %v340
      %v357 = vsub.f32 %v309, %v341
      %v358 = vld [vmem:[%s4] sm:$0xff]
      %v359 = vld [vmem:[%s4 + $0x8] sm:$0xff]
      %v360 = vld [vmem:[%s4 + $0x10] sm:$0xff]
      %v361 = vld [vmem:[%s4 + $0x18] sm:$0xff]
      %v362 = vld [vmem:[%s4 + $0x20] sm:$0xff]
      %v363 = vld [vmem:[%s4 + $0x28] sm:$0xff]
      %v364 = vld [vmem:[%s4 + $0x30] sm:$0xff]
      %v365 = vld [vmem:[%s4 + $0x38] sm:$0xff]
      %v366 = vld [vmem:[%s4 + $0x40] sm:$0xff]
      %v367 = vld [vmem:[%s4 + $0x48] sm:$0xff]
      %v368 = vld [vmem:[%s4 + $0x50] sm:$0xff]
      %v369 = vld [vmem:[%s4 + $0x58] sm:$0xff]
      %v370 = vld [vmem:[%s4 + $0x60] sm:$0xff]
      %v371 = vld [vmem:[%s4 + $0x68] sm:$0xff]
      %v372 = vld [vmem:[%s4 + $0x70] sm:$0xff]
      %v373 = vld [vmem:[%s4 + $0x78] sm:$0xff]
      %v374 = vld [vmem:[%s3] sm:$0x1]
      %375 = vset.pattern.permute.xlu0 0
      %376 = vperm.xlu0 %375, %v358
      %v377 = vpop.permute.xlu0 %376
      %378 = vset.pattern.permute.xlu0 0
      %379 = vperm.xlu0 %378, %v359
      %v380 = vpop.permute.xlu0 %379
      %381 = vset.pattern.permute.xlu0 0
      %382 = vperm.xlu0 %381, %v360
      %v383 = vpop.permute.xlu0 %382
      %384 = vset.pattern.permute.xlu0 0
      %385 = vperm.xlu0 %384, %v361
      %v386 = vpop.permute.xlu0 %385
      %387 = vset.pattern.permute.xlu0 0
      %388 = vperm.xlu0 %387, %v362
      %v389 = vpop.permute.xlu0 %388
      %390 = vset.pattern.permute.xlu0 0
      %391 = vperm.xlu0 %390, %v363
      %v392 = vpop.permute.xlu0 %391
      %393 = vset.pattern.permute.xlu0 0
      %394 = vperm.xlu0 %393, %v364
      %v395 = vpop.permute.xlu0 %394
      %396 = vset.pattern.permute.xlu0 0
      %397 = vperm.xlu0 %396, %v365
      %v398 = vpop.permute.xlu0 %397
      %399 = vset.pattern.permute.xlu0 0
      %400 = vperm.xlu0 %399, %v366
      %v401 = vpop.permute.xlu0 %400
      %402 = vset.pattern.permute.xlu0 0
      %403 = vperm.xlu0 %402, %v367
      %v404 = vpop.permute.xlu0 %403
      %405 = vset.pattern.permute.xlu0 0
      %406 = vperm.xlu0 %405, %v368
      %v407 = vpop.permute.xlu0 %406
      %408 = vset.pattern.permute.xlu0 0
      %409 = vperm.xlu0 %408, %v369
      %v410 = vpop.permute.xlu0 %409
      %411 = vset.pattern.permute.xlu0 0
      %412 = vperm.xlu0 %411, %v370
      %v413 = vpop.permute.xlu0 %412
      %414 = vset.pattern.permute.xlu0 0
      %415 = vperm.xlu0 %414, %v371
      %v416 = vpop.permute.xlu0 %415
      %417 = vset.pattern.permute.xlu0 0
      %418 = vperm.xlu0 %417, %v372
      %v419 = vpop.permute.xlu0 %418
      %420 = vset.pattern.permute.xlu0 0
      %421 = vperm.xlu0 %420, %v373
      %v422 = vpop.permute.xlu0 %421
      %v423 = vperm.slane %v374, 0
      %vm424 = vcmp.eq.s32.totalorder %v377, %v423
      %vm425 = vcmp.eq.s32.totalorder %v380, %v423
      %vm426 = vcmp.eq.s32.totalorder %v383, %v423
      %vm427 = vcmp.eq.s32.totalorder %v386, %v423
      %vm428 = vcmp.eq.s32.totalorder %v389, %v423
      %vm429 = vcmp.eq.s32.totalorder %v392, %v423
      %vm430 = vcmp.eq.s32.totalorder %v395, %v423
      %vm431 = vcmp.eq.s32.totalorder %v398, %v423
      %vm432 = vcmp.eq.s32.totalorder %v401, %v423
      %vm433 = vcmp.eq.s32.totalorder %v404, %v423
      %vm434 = vcmp.eq.s32.totalorder %v407, %v423
      %vm435 = vcmp.eq.s32.totalorder %v410, %v423
      %vm436 = vcmp.eq.s32.totalorder %v413, %v423
      %vm437 = vcmp.eq.s32.totalorder %v416, %v423
      %vm438 = vcmp.eq.s32.totalorder %v419, %v423
      %vm439 = vcmp.eq.s32.totalorder %v422, %v423
      %v440 = vld [vmem:[%s5] sm:$0xff]
      %v441 = vld [vmem:[%s5 + $0x8] sm:$0xff]
      %v442 = vld [vmem:[%s5 + $0x10] sm:$0xff]
      %v443 = vld [vmem:[%s5 + $0x18] sm:$0xff]
      %v444 = vld [vmem:[%s5 + $0x20] sm:$0xff]
      %v445 = vld [vmem:[%s5 + $0x28] sm:$0xff]
      %v446 = vld [vmem:[%s5 + $0x30] sm:$0xff]
      %v447 = vld [vmem:[%s5 + $0x38] sm:$0xff]
      %v448 = vld [vmem:[%s5 + $0x40] sm:$0xff]
      %v449 = vld [vmem:[%s5 + $0x48] sm:$0xff]
      %v450 = vld [vmem:[%s5 + $0x50] sm:$0xff]
      %v451 = vld [vmem:[%s5 + $0x58] sm:$0xff]
      %v452 = vld [vmem:[%s5 + $0x60] sm:$0xff]
      %v453 = vld [vmem:[%s5 + $0x68] sm:$0xff]
      %v454 = vld [vmem:[%s5 + $0x70] sm:$0xff]
      %v455 = vld [vmem:[%s5 + $0x78] sm:$0xff]
      %vm456 = vcmp.gt.s32.totalorder %v440, 0
      %vm457 = vcmp.gt.s32.totalorder %v441, 0
      %vm458 = vcmp.gt.s32.totalorder %v442, 0
      %vm459 = vcmp.gt.s32.totalorder %v443, 0
      %vm460 = vcmp.gt.s32.totalorder %v444, 0
      %vm461 = vcmp.gt.s32.totalorder %v445, 0
      %vm462 = vcmp.gt.s32.totalorder %v446, 0
      %vm463 = vcmp.gt.s32.totalorder %v447, 0
      %vm464 = vcmp.gt.s32.totalorder %v448, 0
      %vm465 = vcmp.gt.s32.totalorder %v449, 0
      %vm466 = vcmp.gt.s32.totalorder %v450, 0
      %vm467 = vcmp.gt.s32.totalorder %v451, 0
      %vm468 = vcmp.gt.s32.totalorder %v452, 0
      %vm469 = vcmp.gt.s32.totalorder %v453, 0
      %vm470 = vcmp.gt.s32.totalorder %v454, 0
      %vm471 = vcmp.gt.s32.totalorder %v455, 0
      %v472 = vsel %vm456, 1, 0
      %v473 = vsel %vm457, 1, 0
      %v474 = vsel %vm458, 1, 0
      %v475 = vsel %vm459, 1, 0
      %v476 = vsel %vm460, 1, 0
      %v477 = vsel %vm461, 1, 0
      %v478 = vsel %vm462, 1, 0
      %v479 = vsel %vm463, 1, 0
      %v480 = vsel %vm464, 1, 0
      %v481 = vsel %vm465, 1, 0
      %v482 = vsel %vm466, 1, 0
      %v483 = vsel %vm467, 1, 0
      %v484 = vsel %vm468, 1, 0
      %v485 = vsel %vm469, 1, 0
      %v486 = vsel %vm470, 1, 0
      %v487 = vsel %vm471, 1, 0
      %488 = vset.pattern.permute.xlu0 0
      %489 = vperm.xlu0 %488, %v472
      %v490 = vpop.permute.xlu0 %489
      %491 = vset.pattern.permute.xlu0 0
      %492 = vperm.xlu0 %491, %v473
      %v493 = vpop.permute.xlu0 %492
      %494 = vset.pattern.permute.xlu0 0
      %495 = vperm.xlu0 %494, %v474
      %v496 = vpop.permute.xlu0 %495
      %497 = vset.pattern.permute.xlu0 0
      %498 = vperm.xlu0 %497, %v475
      %v499 = vpop.permute.xlu0 %498
      %500 = vset.pattern.permute.xlu0 0
      %501 = vperm.xlu0 %500, %v476
      %v502 = vpop.permute.xlu0 %501
      %503 = vset.pattern.permute.xlu0 0
      %504 = vperm.xlu0 %503, %v477
      %v505 = vpop.permute.xlu0 %504
      %506 = vset.pattern.permute.xlu0 0
      %507 = vperm.xlu0 %506, %v478
      %v508 = vpop.permute.xlu0 %507
      %509 = vset.pattern.permute.xlu0 0
      %510 = vperm.xlu0 %509, %v479
      %v511 = vpop.permute.xlu0 %510
      %512 = vset.pattern.permute.xlu0 0
      %513 = vperm.xlu0 %512, %v480
      %v514 = vpop.permute.xlu0 %513
      %515 = vset.pattern.permute.xlu0 0
      %516 = vperm.xlu0 %515, %v481
      %v517 = vpop.permute.xlu0 %516
      %518 = vset.pattern.permute.xlu0 0
      %519 = vperm.xlu0 %518, %v482
      %v520 = vpop.permute.xlu0 %519
      %521 = vset.pattern.permute.xlu0 0
      %522 = vperm.xlu0 %521, %v483
      %v523 = vpop.permute.xlu0 %522
      %524 = vset.pattern.permute.xlu0 0
      %525 = vperm.xlu0 %524, %v484
      %v526 = vpop.permute.xlu0 %525
      %527 = vset.pattern.permute.xlu0 0
      %528 = vperm.xlu0 %527, %v485
      %v529 = vpop.permute.xlu0 %528
      %530 = vset.pattern.permute.xlu0 0
      %531 = vperm.xlu0 %530, %v486
      %v532 = vpop.permute.xlu0 %531
      %533 = vset.pattern.permute.xlu0 0
      %534 = vperm.xlu0 %533, %v487
      %v535 = vpop.permute.xlu0 %534
      %vm536 = vcmp.eq.s32.totalorder %v490, 1
      %vm537 = vcmp.eq.s32.totalorder %v493, 1
      %vm538 = vcmp.eq.s32.totalorder %v496, 1
      %vm539 = vcmp.eq.s32.totalorder %v499, 1
      %vm540 = vcmp.eq.s32.totalorder %v502, 1
      %vm541 = vcmp.eq.s32.totalorder %v505, 1
      %vm542 = vcmp.eq.s32.totalorder %v508, 1
      %vm543 = vcmp.eq.s32.totalorder %v511, 1
      %vm544 = vcmp.eq.s32.totalorder %v514, 1
      %vm545 = vcmp.eq.s32.totalorder %v517, 1
      %vm546 = vcmp.eq.s32.totalorder %v520, 1
      %vm547 = vcmp.eq.s32.totalorder %v523, 1
      %vm548 = vcmp.eq.s32.totalorder %v526, 1
      %vm549 = vcmp.eq.s32.totalorder %v529, 1
      %vm550 = vcmp.eq.s32.totalorder %v532, 1
      %vm551 = vcmp.eq.s32.totalorder %v535, 1
      %vm552 = vmand %vm424, %vm536
      %vm553 = vmand %vm425, %vm537
      %vm554 = vmand %vm426, %vm538
      %vm555 = vmand %vm427, %vm539
      %vm556 = vmand %vm428, %vm540
      %vm557 = vmand %vm429, %vm541
      %vm558 = vmand %vm430, %vm542
      %vm559 = vmand %vm431, %vm543
      %vm560 = vmand %vm432, %vm544
      %vm561 = vmand %vm433, %vm545
      %vm562 = vmand %vm434, %vm546
      %vm563 = vmand %vm435, %vm547
      %vm564 = vmand %vm436, %vm548
      %vm565 = vmand %vm437, %vm549
      %vm566 = vmand %vm438, %vm550
      %vm567 = vmand %vm439, %vm551
      %vm568 = vmxor %vm424, 1
      %vm569 = vmxor %vm425, 1
      %vm570 = vmxor %vm426, 1
      %vm571 = vmxor %vm427, 1
      %vm572 = vmxor %vm428, 1
      %vm573 = vmxor %vm429, 1
      %vm574 = vmxor %vm430, 1
      %vm575 = vmxor %vm431, 1
      %vm576 = vmxor %vm432, 1
      %vm577 = vmxor %vm433, 1
      %vm578 = vmxor %vm434, 1
      %vm579 = vmxor %vm435, 1
      %vm580 = vmxor %vm436, 1
      %vm581 = vmxor %vm437, 1
      %vm582 = vmxor %vm438, 1
      %vm583 = vmxor %vm439, 1
      %vm584 = vmand %vm568, %vm536
      %vm585 = vmand %vm569, %vm537
      %vm586 = vmand %vm570, %vm538
      %vm587 = vmand %vm571, %vm539
      %vm588 = vmand %vm572, %vm540
      %vm589 = vmand %vm573, %vm541
      %vm590 = vmand %vm574, %vm542
      %vm591 = vmand %vm575, %vm543
      %vm592 = vmand %vm576, %vm544
      %vm593 = vmand %vm577, %vm545
      %vm594 = vmand %vm578, %vm546
      %vm595 = vmand %vm579, %vm547
      %vm596 = vmand %vm580, %vm548
      %vm597 = vmand %vm581, %vm549
      %vm598 = vmand %vm582, %vm550
      %vm599 = vmand %vm583, %vm551
      %v600 = vsel %vm552, %v342, -1e+30
      %v601 = vsel %vm553, %v343, -1e+30
      %v602 = vsel %vm554, %v344, -1e+30
      %v603 = vsel %vm555, %v345, -1e+30
      %v604 = vsel %vm556, %v346, -1e+30
      %v605 = vsel %vm557, %v347, -1e+30
      %v606 = vsel %vm558, %v348, -1e+30
      %v607 = vsel %vm559, %v349, -1e+30
      %v608 = vsel %vm560, %v350, -1e+30
      %v609 = vsel %vm561, %v351, -1e+30
      %v610 = vsel %vm562, %v352, -1e+30
      %v611 = vsel %vm563, %v353, -1e+30
      %v612 = vsel %vm564, %v354, -1e+30
      %v613 = vsel %vm565, %v355, -1e+30
      %v614 = vsel %vm566, %v356, -1e+30
      %v615 = vsel %vm567, %v357, -1e+30
      %v616 = vmax.f32 %v600, %v604
      %v617 = vmax.f32 %v601, %v605
      %v618 = vmax.f32 %v602, %v606
      %v619 = vmax.f32 %v603, %v607
      %v620 = vmax.f32 %v616, %v608
      %v621 = vmax.f32 %v617, %v609
      %v622 = vmax.f32 %v618, %v610
      %v623 = vmax.f32 %v619, %v611
      %v624 = vmax.f32 %v620, %v612
      %v625 = vmax.f32 %v621, %v613
      %v626 = vmax.f32 %v622, %v614
      %v627 = vmax.f32 %v623, %v615
      %v628 = vmax.f32 %v624, %v625
      %v629 = vmax.f32 %v626, %v627
      %v630 = vmax.f32 %v628, %v629
      %v631 = vrot.slane %v630, 4
      %v632 = vmax.f32 %v630, %v631
      %v633 = vrot.slane %v632, 2
      %v634 = vmax.f32 %v632, %v633
      %v635 = vrot.slane %v634, 1
      %v636 = vmax.f32 %v634, %v635
      %v637 = vsel %vm584, %v342, 1e+30
      %v638 = vsel %vm585, %v343, 1e+30
      %v639 = vsel %vm586, %v344, 1e+30
      %v640 = vsel %vm587, %v345, 1e+30
      %v641 = vsel %vm588, %v346, 1e+30
      %v642 = vsel %vm589, %v347, 1e+30
      %v643 = vsel %vm590, %v348, 1e+30
      %v644 = vsel %vm591, %v349, 1e+30
      %v645 = vsel %vm592, %v350, 1e+30
      %v646 = vsel %vm593, %v351, 1e+30
      %v647 = vsel %vm594, %v352, 1e+30
      %v648 = vsel %vm595, %v353, 1e+30
      %v649 = vsel %vm596, %v354, 1e+30
      %v650 = vsel %vm597, %v355, 1e+30
      %v651 = vsel %vm598, %v356, 1e+30
      %v652 = vsel %vm599, %v357, 1e+30
      %v653 = vmin.f32 %v637, %v641
      %v654 = vmin.f32 %v638, %v642
      %v655 = vmin.f32 %v639, %v643
      %v656 = vmin.f32 %v640, %v644
      %v657 = vmin.f32 %v653, %v645
      %v658 = vmin.f32 %v654, %v646
      %v659 = vmin.f32 %v655, %v647
      %v660 = vmin.f32 %v656, %v648
      %v661 = vmin.f32 %v657, %v649
      %v662 = vmin.f32 %v658, %v650
      %v663 = vmin.f32 %v659, %v651
      %v664 = vmin.f32 %v660, %v652
      %v665 = vmin.f32 %v661, %v662
      %v666 = vmin.f32 %v663, %v664
      %v667 = vmin.f32 %v665, %v666
      %v668 = vrot.slane %v667, 4
      %v669 = vmin.f32 %v667, %v668
      %v670 = vrot.slane %v669, 2
      %v671 = vmin.f32 %v669, %v670
      %v672 = vrot.slane %v671, 1
      %v673 = vmin.f32 %v671, %v672
      %v674 = vmax.f32 %v636, 1e-12
      %v675 = vrsqrt.pop %v674
      %v676 = vmul.f32 %v675, %v674
      %v677 = vmul.f32 %v676, %v675
      %v678 = vmul.f32 0.5, %v677
      %v679 = vsub.f32 1.5, %v678
      %v680 = vmul.f32 %v675, %v679
      %v681 = vmul.f32 %v674, %v680
      %vm682 = vcmp.eq.f32.partialorder %v674, inf
      %v683 = vsel %vm682, %v674, %v681
      %vm684 = vcmp.eq.f32.partialorder %v674, 0.0
      %v685 = vand.u32 %v674, 2147483648
      %v686 = vsel %vm684, %v685, %v683
      %v687 = vmax.f32 %v673, 1e-12
      %v688 = vrsqrt.pop %v687
      %v689 = vmul.f32 %v688, %v687
      %v690 = vmul.f32 %v689, %v688
      %v691 = vmul.f32 0.5, %v690
      %v692 = vsub.f32 1.5, %v691
      %v693 = vmul.f32 %v688, %v692
      %v694 = vmul.f32 %v687, %v693
      %vm695 = vcmp.eq.f32.partialorder %v687, inf
      %v696 = vsel %vm695, %v687, %v694
      %vm697 = vcmp.eq.f32.partialorder %v687, 0.0
      %v698 = vand.u32 %v687, 2147483648
      %v699 = vsel %vm697, %v698, %v696
      %v700 = vsub.f32 %v686, %v699
      %v701 = vadd.f32 %v700, 0.3
      %v702 = vmax.f32 %v701, 0.0
      %703 = vst [vmem:[#allocation3] sm:$0x1] %v702
    $region33: #{tpu_custom_call.1} parent=1 // pred_fallthru
      _
    // Predicated region
    $region34: #{tpu_custom_call.1} parent=1 // pred_check
      _
    $region35: #{tpu_custom_call.1} parent=1 // pred_check_branch
      %705 = sbr.rel (0) target = $region37
    $region36: #{tpu_custom_call.1} parent=1 // pred_region
      %707 = vsyncadd [#allocation4], 0
      %s709 = sshll.u32 [#allocation3], 4
      %s710 = int_to_ptr.vmem [resolvable:$true] %s709
      %s711 = sshll.u32 %s6, 4
      %s712 = int_to_ptr.hbm [resolvable:$true] %s711
      %714 = dma.vmem_to_hbm [thread:$0]  %s710, 16, %s712, [#allocation4]
    $region37: #{tpu_custom_call.1} parent=1 // pred_fallthru
      _
    // Predicated region
    $region38: #{tpu_custom_call.1} parent=1 // pred_check
      _
    $region39: #{tpu_custom_call.1} parent=1 // pred_check_branch
      %716 = sbr.rel (0) target = $region41
    $region40: #{tpu_custom_call.1} parent=1 // pred_region
      %718 = dma.done [#allocation4], 16
    $region41: #{tpu_custom_call.1} parent=1 // pred_fallthru
      _
    %719 = vsyncpa [#allocation4], 1

</llo_original>
